<compile_context>
chip_gen: v7x
topology: tpu7x:2x2x1
jax: 0.10.0
libtpu: 0.0.40
codegen_flags: <defaults>
</compile_context>

<pallas_src>
import math
from functools import partial

import jax
import jax.numpy as jnp
from jax.experimental import pallas as pl
from jax.experimental.pallas import tpu as pltpu

LANE = 512  # wide lane dim -> bulk unmasked vector stores


def _round_up(x, m):
    return (x + m - 1) // m * m


# ----------------------------- forward kernel ------------------------------

def _mlp_forward_kernel(x_ref, w1_ref, b1_ref, w2_ref, b2_ref, o_ref):
    # hidden = relu(x @ W1 + b1)
    h = jnp.dot(x_ref[...], w1_ref[...], preferred_element_type=jnp.float32)
    h = jnp.maximum(h + b1_ref[...], 0.0)            # b1 is (1, H) -> broadcasts
    # out = h @ W2 + b2
    o_ref[...] = jnp.dot(h, w2_ref[...],
                         preferred_element_type=jnp.float32) + b2_ref[...]


def prepare_mlp_params(w1, b1, w2, b2):
    """Pad nn.Linear weights (stored [D_in, D_out] = torch weight.T) to full
    128-lane multiples ONCE; hoisted out of the per-forward path."""
    D_in, H = w1.shape
    D_out = w2.shape[1]
    Dp, Hp, Op = _round_up(D_in, 128), _round_up(H, 128), _round_up(D_out, 128)
    padded = (
        jnp.pad(w1, ((0, Dp - D_in), (0, Hp - H))),
        jnp.pad(b1, ((0, 0), (0, Hp - H))),
        jnp.pad(w2, ((0, Hp - H), (0, Op - D_out))),
        jnp.pad(b2, ((0, 0), (0, Op - D_out))),
    )
    return padded, (D_in, H, D_out)


@partial(jax.jit, static_argnames=("dims",))
def mlp_forward(x, padded_params, dims):
    """nn.Linear(x) = x @ W.T + b; weights are stored pre-transposed+padded."""
    w1p, b1p, w2p, b2p = padded_params
    D_in, H, D_out = dims
    B = x.shape[0]
    Bp = _round_up(B, 8)                      # sublane multiple
    Dp, Hp, Op = w1p.shape[0], w2p.shape[0], w2p.shape[1]
    xp = jnp.pad(x, ((0, Bp - B), (0, Dp - D_in)))

    out = pl.pallas_call(
        _mlp_forward_kernel,
        out_shape=jax.ShapeDtypeStruct((Bp, Op), jnp.float32),
        grid=(1,),
        in_specs=[
            pl.BlockSpec((Bp, Dp), lambda i: (0, 0)),
            pl.BlockSpec((Dp, Hp), lambda i: (0, 0)),
            pl.BlockSpec((1, Hp), lambda i: (0, 0)),
            pl.BlockSpec((Hp, Op), lambda i: (0, 0)),
            pl.BlockSpec((1, Op), lambda i: (0, 0)),
        ],
        out_specs=pl.BlockSpec((Bp, Op), lambda i: (0, 0)),
        compiler_params=pltpu.CompilerParams(
            dimension_semantics=("arbitrary",)),
    )(xp, w1p, b1p, w2p, b2p)
    # TODO(synk): at real layer widths / batch >=128, switch to a K/N-tiled
    # matmul grid with an f32 accumulator (single-block layout won't fit v7x
    # 64 MiB VMEM and has no DMA/compute overlap).
    return out[:B, :D_out]


# --------------------------- AdamW update kernel ----------------------------

def _vmem_budget():
    """Per-generation tile budget.  7 streams (4 in + 3 out) x 2 buffers x
    block bytes must fit comfortably in scoped VMEM."""
    try:
        info = pltpu.get_tpu_info()
        vmem = getattr(info, "vmem_capacity_bytes", 64 * 1024 * 1024)
    except Exception:                       # no query available -> conservative
        vmem = 64 * 1024 * 1024
    if vmem >= 100 * 1024 * 1024:           # v5e / v6e: 128 MiB physical
        # tile_n=2048, L=512 f32 -> 4 MiB/block; 7*2*4 = 56 MiB under 64 MiB cap
        return 2048, 64 * 1024 * 1024
    # v7x: 64 MiB/TC physical -> tile_n=1024 -> 2 MiB/block; 7*2*2 = 28 MiB
    return 1024, 48 * 1024 * 1024


def _plan_slab(n_elems, lane=LANE):
    """Choose (rows, tile_n, vmem_limit) for a flat parameter slab of n_elems."""
    tile_max, vmem_limit = _vmem_budget()
    rows = _round_up(max(pl.cdiv(n_elems, lane), 8), 8)
    tile_n = min(tile_max, rows)
    rows = _round_up(rows, tile_n)          # full blocks only
    grid = rows // tile_n
    # v7x 2-TC sharding: avoid a small odd grid leaving one core idle.
    if 1 < grid < 8 and grid % 2 == 1 and tile_n % 16 == 0:
        tile_n //= 2
    return rows, tile_n, vmem_limit


def to_slab(tensors, rows, lane=LANE):
    """Concatenate flattened tensors into a lane-dense (rows, lane) f32 slab."""
    flat = jnp.concatenate([t.reshape(-1) for t in tensors]).astype(jnp.float32)
    n = flat.shape[0]
    flat = jnp.pad(flat, (0, rows * lane - n))
    return flat.reshape(rows, lane)


def _make_adamw_kernel(lr, beta1, beta2, eps, weight_decay, t):
    # Bias corrections folded into host-side constants (t is a host int,
    # exactly like self.t in the PyTorch module):
    #   m_hat/(sqrt(v_hat)+eps) == m * (sqrt(bc2)/bc1) / (sqrt(v) + eps*sqrt(bc2))
    bc1 = 1.0 - beta1 ** t
    bc2 = 1.0 - beta2 ** t
    neg_step = -lr * math.sqrt(bc2) / bc1
    eps_hat = eps * math.sqrt(bc2)
    c1 = 1.0 - beta1
    c2 = 1.0 - beta2

    def kernel(g_ref, p_ref, m_ref, v_ref, p_out_ref, m_out_ref, v_out_ref):
        g = g_ref[...]
        p = p_ref[...]
        m_new = beta1 * m_ref[...] + c1 * g
        v_new = beta2 * v_ref[...] + c2 * g * g
        upd = neg_step * m_new / (jnp.sqrt(v_new) + eps_hat) + weight_decay * p
        m_out_ref[...] = m_new
        v_out_ref[...] = v_new
        # update_module() in learn2learn applies p <- p + p.update
        p_out_ref[...] = p + upd

    return kernel


@partial(jax.jit,
         static_argnames=("lr", "beta1", "beta2", "eps", "weight_decay",
                          "t", "tile_n", "vmem_limit"),
         donate_argnums=(1, 2, 3))
def adamw_maml_update(grads_flat, params_flat, m_flat, v_flat, *,
                      lr, beta1, beta2, eps, weight_decay, t,
                      tile_n, vmem_limit):
    """All array inputs are [N, LANE] f32 lane-dense padded flat slabs.

    Returns (p_new, m_new, v_new).  p/m/v are donated + aliased in place, so
    the persistent optimizer state is updated with no extra HBM copies; the
    redundant `upd` stream is not materialized (upd = p_new - p)."""
    N, L = params_flat.shape
    assert N % tile_n == 0 and L % 128 == 0 and tile_n % 8 == 0

    kernel = _make_adamw_kernel(lr, beta1, beta2, eps, weight_decay, t)
    out_sds = jax.ShapeDtypeStruct((N, L), jnp.float32)
    spec = pl.BlockSpec((tile_n, L), lambda i: (i, 0))
    n_elems = N * L
    cost = pl.CostEstimate(flops=10 * n_elems,
                           transcendentals=n_elems,        # one sqrt / element
                           bytes_accessed=28 * n_elems)    # 4 reads + 3 writes

    return pl.pallas_call(
        kernel,
        out_shape=(out_sds, out_sds, out_sds),              # p_new, m_new, v_new
        grid=(N // tile_n,),
        in_specs=[spec, spec, spec, spec],
        out_specs=[spec, spec, spec],
        input_output_aliases={1: 0, 2: 1, 3: 2},            # p, m, v in place
        cost_estimate=cost,
        compiler_params=pltpu.CompilerParams(
            dimension_semantics=("parallel",),               # 2-TC sharding on v7x
            vmem_limit_bytes=vmem_limit),
    )(grads_flat, params_flat, m_flat, v_flat)


# --------------------------------- glue -------------------------------------

if __name__ == "__main__":
    key = jax.random.PRNGKey(0)
    k1, k2, k3, k4, k5, k6 = jax.random.split(key, 6)

    # Small shapes implied by the wrapped module (2-layer MLP).
    B, D_in, H, D_out = 8, 32, 64, 16

    # Deterministic parameter init (synthetic, no checkpoint load).
    w1 = jax.random.normal(k1, (D_in, H), jnp.float32) * 0.1
    b1 = jax.random.normal(k2, (1, H), jnp.float32) * 0.01
    w2 = jax.random.normal(k3, (H, D_out), jnp.float32) * 0.1
    b2 = jax.random.normal(k4, (1, D_out), jnp.float32) * 0.01
    x = jax.random.normal(k5, (B, D_in), jnp.float32)

    # ---- forward (MAMLAdamW.forward == wrapped module forward) ----
    padded_params, dims = prepare_mlp_params(w1, b1, w2, b2)  # padded once
    out = jax.block_until_ready(mlp_forward(x, padded_params, dims))

    # pure-JAX reference check
    ref = jnp.maximum(x @ w1 + b1, 0.0) @ w2 + b2
    assert jnp.allclose(out, ref, atol=1e-5, rtol=1e-5), "forward mismatch"

    # ---- AdamW maml_update (one adaptation step, t = 1) ----
    lr, betas, eps, weight_decay = 1e-3, (0.9, 0.999), 1e-8, 0.01
    t = 1  # self.t after the first maml_update

    # Synthetic gradients for each parameter (stand-in for autograd.grad;
    # the update math itself is the Pallas kernel).
    # TODO(synk): torch.autograd.grad graph re-routing (clone_module /
    # update_module plumbing) has no Pallas equivalent; only the numeric
    # AdamW update is kernelized.
    params = [w1, b1, w2, b2]
    gkeys = jax.random.split(k6, len(params))
    grads = [jax.random.normal(gk, p.shape, jnp.float32) * 0.05
             for gk, p in zip(gkeys, params)]

    # Persistent optimizer state lives in the padded slab layout (built once,
    # donated in place every step); only grads are flattened per step.
    n_param_elems = sum(int(p.size) for p in params)
    rows, tile_n, vmem_limit = _plan_slab(n_param_elems)
    p_flat = to_slab(params, rows)
    m_flat = jnp.zeros_like(p_flat)   # init_adamw_params: m = zeros_like(p)
    v_flat = jnp.zeros_like(p_flat)   # init_adamw_params: v = zeros_like(p)
    g_flat = to_slab(grads, rows)

    # pure-JAX reference (original, un-refactored formula) computed BEFORE the
    # update so it reads the state buffers before they are donated.
    m_ref = betas[0] * m_flat + (1 - betas[0]) * g_flat
    v_ref = betas[1] * v_flat + (1 - betas[1]) * g_flat * g_flat
    m_hat = m_ref / (1 - betas[0] ** t)
    v_hat = v_ref / (1 - betas[1] ** t)
    upd_ref = -lr * m_hat / (jnp.sqrt(v_hat) + eps) + weight_decay * p_flat
    p_ref = p_flat + upd_ref

    p_flat, m_flat, v_flat = adamw_maml_update(
        g_flat, p_flat, m_flat, v_flat,
        lr=lr, beta1=betas[0], beta2=betas[1], eps=eps,
        weight_decay=weight_decay, t=t, tile_n=tile_n, vmem_limit=vmem_limit)
    jax.block_until_ready(p_flat)

    assert jnp.allclose(m_flat, m_ref, atol=1e-6, rtol=1e-5), "m mismatch"
    assert jnp.allclose(v_flat, v_ref, atol=1e-6, rtol=1e-5), "v mismatch"
    assert jnp.allclose(p_flat, p_ref, atol=1e-6, rtol=1e-5), "p mismatch"

    print("KERNEL_OK")
</pallas_src>

<mosaic_0001>
module attributes {stable_mosaic.version = 11 : i64} {
  func.func @_mlp_forward_kernel(%arg0: i32, %arg1: memref<8x128xf32, #tpu.memory_space<vmem>>, %arg2: memref<128x128xf32, #tpu.memory_space<vmem>>, %arg3: memref<1x128xf32, #tpu.memory_space<vmem>>, %arg4: memref<128x128xf32, #tpu.memory_space<vmem>>, %arg5: memref<1x128xf32, #tpu.memory_space<vmem>>, %arg6: memref<8x128xf32, #tpu.memory_space<vmem>>) attributes {dimension_semantics = [#tpu.dimension_semantics<arbitrary>], iteration_bounds = array<i64: 1>, scalar_prefetch = 0 : i64, scratch_operands = 0 : i64, tpu.core_type = #tpu.core_type<tc>, window_params = [{pipeline_mode = #tpu.pipeline_mode<synchronous>, transform_indices = @transform_0, window_bounds = array<i64: 8, 128>}, {pipeline_mode = #tpu.pipeline_mode<synchronous>, transform_indices = @transform_1, window_bounds = array<i64: 128, 128>}, {pipeline_mode = #tpu.pipeline_mode<synchronous>, transform_indices = @transform_2, window_bounds = array<i64: 1, 128>}, {pipeline_mode = #tpu.pipeline_mode<synchronous>, transform_indices = @transform_3, window_bounds = array<i64: 128, 128>}, {pipeline_mode = #tpu.pipeline_mode<synchronous>, transform_indices = @transform_4, window_bounds = array<i64: 1, 128>}, {pipeline_mode = #tpu.pipeline_mode<synchronous>, transform_indices = @transform_5, window_bounds = array<i64: 8, 128>}]} {
    %c0 = arith.constant 0 : index
    %c0_0 = arith.constant 0 : index
    %0 = vector.load %arg1[%c0, %c0_0] : memref<8x128xf32, #tpu.memory_space<vmem>>, vector<8x128xf32>
    %c0_1 = arith.constant 0 : index
    %c0_2 = arith.constant 0 : index
    %1 = vector.load %arg2[%c0_1, %c0_2] : memref<128x128xf32, #tpu.memory_space<vmem>>, vector<128x128xf32>
    %cst = arith.constant dense<0.000000e+00> : vector<8x128xf32>
    %2 = tpu.matmul %0, %1, %cst {dimension_numbers = #tpu.dot_dimension_numbers<[1], [0], [0], [1], [0, 0, 1, 1], [], []>} : vector<8x128xf32>, vector<128x128xf32>, vector<8x128xf32> -> vector<8x128xf32>
    %c0_3 = arith.constant 0 : index
    %c0_4 = arith.constant 0 : index
    %3 = vector.load %arg3[%c0_3, %c0_4] : memref<1x128xf32, #tpu.memory_space<vmem>>, vector<1x128xf32>
    %4 = vector.broadcast %3 : vector<1x128xf32> to vector<8x128xf32>
    %5 = arith.addf %2, %4 : vector<8x128xf32>
    %cst_5 = arith.constant 0.000000e+00 : f32
    %6 = vector.broadcast %cst_5 : f32 to vector<8x128xf32>
    %7 = arith.maximumf %5, %6 : vector<8x128xf32>
    %c0_6 = arith.constant 0 : index
    %c0_7 = arith.constant 0 : index
    %8 = vector.load %arg4[%c0_6, %c0_7] : memref<128x128xf32, #tpu.memory_space<vmem>>, vector<128x128xf32>
    %cst_8 = arith.constant dense<0.000000e+00> : vector<8x128xf32>
    %9 = tpu.matmul %7, %8, %cst_8 {dimension_numbers = #tpu.dot_dimension_numbers<[1], [0], [0], [1], [0, 0, 1, 1], [], []>} : vector<8x128xf32>, vector<128x128xf32>, vector<8x128xf32> -> vector<8x128xf32>
    %c0_9 = arith.constant 0 : index
    %c0_10 = arith.constant 0 : index
    %10 = vector.load %arg5[%c0_9, %c0_10] : memref<1x128xf32, #tpu.memory_space<vmem>>, vector<1x128xf32>
    %11 = vector.broadcast %10 : vector<1x128xf32> to vector<8x128xf32>
    %12 = arith.addf %9, %11 : vector<8x128xf32>
    %c0_11 = arith.constant 0 : index
    %c0_12 = arith.constant 0 : index
    %13 = vector.load %arg6[%c0_11, %c0_12] : memref<8x128xf32, #tpu.memory_space<vmem>>, vector<8x128xf32>
    tpu.vector_store %arg6[%c0_11, %c0_12], %12 {strides = array<i32>} : memref<8x128xf32, #tpu.memory_space<vmem>>, vector<8x128xf32>,
    return
  }
  func.func @transform_0(%arg0: i32) -> (i32, i32) {
    %c0_i32 = arith.constant 0 : i32
    %c0_i32_0 = arith.constant 0 : i32
    %c0_i32_1 = arith.constant 0 : i32
    return %c0_i32, %c0_i32_0 : i32, i32
  }
  func.func @transform_1(%arg0: i32) -> (i32, i32) {
    %c0_i32 = arith.constant 0 : i32
    %c0_i32_0 = arith.constant 0 : i32
    %c0_i32_1 = arith.constant 0 : i32
    return %c0_i32, %c0_i32_0 : i32, i32
  }
  func.func @transform_2(%arg0: i32) -> (i32, i32) {
    %c0_i32 = arith.constant 0 : i32
    %c0_i32_0 = arith.constant 0 : i32
    %c0_i32_1 = arith.constant 0 : i32
    return %c0_i32, %c0_i32_0 : i32, i32
  }
  func.func @transform_3(%arg0: i32) -> (i32, i32) {
    %c0_i32 = arith.constant 0 : i32
    %c0_i32_0 = arith.constant 0 : i32
    %c0_i32_1 = arith.constant 0 : i32
    return %c0_i32, %c0_i32_0 : i32, i32
  }
  func.func @transform_4(%arg0: i32) -> (i32, i32) {
    %c0_i32 = arith.constant 0 : i32
    %c0_i32_0 = arith.constant 0 : i32
    %c0_i32_1 = arith.constant 0 : i32
    return %c0_i32, %c0_i32_0 : i32, i32
  }
  func.func @transform_5(%arg0: i32) -> (i32, i32) {
    %c0_i32 = arith.constant 0 : i32
    %c0_i32_0 = arith.constant 0 : i32
    %c0_i32_1 = arith.constant 0 : i32
    return %c0_i32, %c0_i32_0 : i32, i32
  }
}

</mosaic_0001>

<llo_original>
// kernel: mlp_forward.1
$region0: #{mlp_forward.1}
  #allocation0 [shape = 'u32[]', space=smem, size = 0x4, offset = 0x4, fixed_abs, tag = 'smem constant byte address 0x4 - core index']
  #allocation1 [shape = 'u32[144,128]{1,0:T(1,128)}', space=vmem, size = 0x12000, scoped, tag = 'internal scratch']
  %s0 = inlined_call_operand.vmem [shape: f32[8,128], index: 0, kind: input, shape index: {}]
  %s1 = inlined_call_operand.hbm [shape: f32[128,128], index: 1, kind: input, shape index: {}]
  %s2 = inlined_call_operand.vmem [shape: f32[1,128], index: 2, kind: input, shape index: {}]
  %s3 = inlined_call_operand.hbm [shape: f32[128,128], index: 3, kind: input, shape index: {}]
  %s4 = inlined_call_operand.vmem [shape: f32[1,128], index: 4, kind: input, shape index: {}]
  %s5 = inlined_call_operand.hbm [shape: f32[8,128], index: 5, kind: output, shape index: {}]
  %s6 = sld [smem:[#allocation0]]
  $region38: #{mlp_forward.1} parent=0
    _
  %s8 = ssub.s32 1, %s6
  %s9 = scalar_select 0, %s8, %s6
  $region1: #{mlp_forward.1} parent=0
    #allocation2 [shape = 'u8[65536]{0}', space=vmem, size = 0x10000, scoped, tag = 'input window, operand 1, single buffered']
    #allocation3 [shape = 's32[1]{0}', space=sflag, size = 0x4, scoped, tag = 'scoped memory for mlp_forward.1']
    #allocation4 [shape = 's32[1]{0}', space=sflag, size = 0x4, scoped, tag = 'scoped memory for mlp_forward.1']
    #allocation5 [shape = 'u8[65536]{0}', space=vmem, size = 0x10000, scoped, tag = 'input window, operand 3, single buffered']
    #allocation6 [shape = 's32[1]{0}', space=sflag, size = 0x4, scoped, tag = 'scoped memory for mlp_forward.1']
    #allocation7 [shape = 'u8[4096]{0}', space=vmem, size = 0x1000, scoped, tag = 'output window, operand 0, single buffered']
    %10 = vsyncpa [#allocation3], 0
    %11 = vsyncpa [#allocation6], 0
    %12 = vsyncpa [#allocation4], 0
    // Predicated region
    $region2: #{mlp_forward.1} parent=1 // pred_check
      _
    $region3: #{mlp_forward.1} parent=1 // pred_check_branch
      %14 = sbr.rel (0) target = $region5
    $region4: #{mlp_forward.1} parent=1 // pred_region
      _
    $region5: #{mlp_forward.1} parent=1 // pred_fallthru
      _
    // Predicated region
    $region6: #{mlp_forward.1} parent=1 // pred_check
      _
    $region7: #{mlp_forward.1} parent=1 // pred_check_branch
      %16 = sbr.rel (0) target = $region9
    $region8: #{mlp_forward.1} parent=1 // pred_region
      %s18 = ssub.s32 2048, 2048
      %19 = vsyncadd [#allocation3], %s18
      %s20 = sshll.u32 [#allocation2], 4
      %s21 = int_to_ptr.vmem [resolvable:$true] %s20
      %26 = dma.hbm_to_vmem [thread:$0]  %s1, 2048, %s21, [#allocation3], 128, 128, 8
    $region9: #{mlp_forward.1} parent=1 // pred_fallthru
      _
    // Predicated region
    $region10: #{mlp_forward.1} parent=1 // pred_check
      _
    $region11: #{mlp_forward.1} parent=1 // pred_check_branch
      %28 = sbr.rel (0) target = $region13
    $region12: #{mlp_forward.1} parent=1 // pred_region
      _
    $region13: #{mlp_forward.1} parent=1 // pred_fallthru
      _
    // Predicated region
    $region14: #{mlp_forward.1} parent=1 // pred_check
      _
    $region15: #{mlp_forward.1} parent=1 // pred_check_branch
      %30 = sbr.rel (0) target = $region17
    $region16: #{mlp_forward.1} parent=1 // pred_region
      %s32 = ssub.s32 2048, 2048
      %33 = vsyncadd [#allocation6], %s32
      %s34 = sshll.u32 [#allocation5], 4
      %s35 = int_to_ptr.vmem [resolvable:$true] %s34
      %40 = dma.hbm_to_vmem [thread:$0]  %s3, 2048, %s35, [#allocation6], 128, 128, 8
    $region17: #{mlp_forward.1} parent=1 // pred_fallthru
      _
    // Predicated region
    $region18: #{mlp_forward.1} parent=1 // pred_check
      _
    $region19: #{mlp_forward.1} parent=1 // pred_check_branch
      %42 = sbr.rel (0) target = $region21
    $region20: #{mlp_forward.1} parent=1 // pred_region
      _
    $region21: #{mlp_forward.1} parent=1 // pred_fallthru
      _
    // Predicated region
    $region22: #{mlp_forward.1} parent=1 // pred_check
      _
    $region23: #{mlp_forward.1} parent=1 // pred_check_branch
      %44 = sbr.rel (0) target = $region25
    $region24: #{mlp_forward.1} parent=1 // pred_region
      %45 = dma.done [#allocation3], 2048
    $region25: #{mlp_forward.1} parent=1 // pred_fallthru
      _
    // Predicated region
    $region26: #{mlp_forward.1} parent=1 // pred_check
      _
    $region27: #{mlp_forward.1} parent=1 // pred_check_branch
      %47 = sbr.rel (0) target = $region29
    $region28: #{mlp_forward.1} parent=1 // pred_region
      %48 = dma.done [#allocation6], 2048
    $region29: #{mlp_forward.1} parent=1 // pred_fallthru
      _
    %v49 = vld [vmem:[%s0] sm:$0xff]
    %v50 = vld [vmem:[#allocation2] sm:$0xff]
    %v51 = vld [vmem:[#allocation2 + $0x8] sm:$0xff]
    %v52 = vld [vmem:[#allocation2 + $0x10] sm:$0xff]
    %v53 = vld [vmem:[#allocation2 + $0x18] sm:$0xff]
    %v54 = vld [vmem:[#allocation2 + $0x20] sm:$0xff]
    %v55 = vld [vmem:[#allocation2 + $0x28] sm:$0xff]
    %v56 = vld [vmem:[#allocation2 + $0x30] sm:$0xff]
    %v57 = vld [vmem:[#allocation2 + $0x38] sm:$0xff]
    %v58 = vld [vmem:[#allocation2 + $0x40] sm:$0xff]
    %v59 = vld [vmem:[#allocation2 + $0x48] sm:$0xff]
    %v60 = vld [vmem:[#allocation2 + $0x50] sm:$0xff]
    %v61 = vld [vmem:[#allocation2 + $0x58] sm:$0xff]
    %v62 = vld [vmem:[#allocation2 + $0x60] sm:$0xff]
    %v63 = vld [vmem:[#allocation2 + $0x68] sm:$0xff]
    %v64 = vld [vmem:[#allocation2 + $0x70] sm:$0xff]
    %v65 = vld [vmem:[#allocation2 + $0x78] sm:$0xff]
    %v66 = vld [vmem:[%s2] sm:$0x1]
    %v68 = vlaneseq
    %v69 = vshrl.u32 %v68, 7
    %v70 = vsub.s32 0, %v69
    %v71 = vrot.slane %v66, %v70
    %73 = vmatprep.subr.mxu0 0.0
    %74 = vmatpush1.msra.mxu0 %v50
    %75 = vmatprep.subr.mxu0 0.0
    %76 = vmatpush1.msra.mxu0 %v51
    %77 = vmatprep.subr.mxu0 0.0
    %78 = vmatpush1.msra.mxu0 %v52
    %79 = vmatprep.subr.mxu0 0.0
    %80 = vmatpush1.msra.mxu0 %v53
    %81 = vmatprep.subr.mxu0 0.0
    %82 = vmatpush1.msra.mxu0 %v54
    %83 = vmatprep.subr.mxu0 0.0
    %84 = vmatpush1.msra.mxu0 %v55
    %85 = vmatprep.subr.mxu0 0.0
    %86 = vmatpush1.msra.mxu0 %v56
    %87 = vmatprep.subr.mxu0 0.0
    %88 = vmatpush1.msra.mxu0 %v57
    %89 = vmatprep.subr.mxu0 0.0
    %90 = vmatpush1.msra.mxu0 %v58
    %91 = vmatprep.subr.mxu0 0.0
    %92 = vmatpush1.msra.mxu0 %v59
    %93 = vmatprep.subr.mxu0 0.0
    %94 = vmatpush1.msra.mxu0 %v60
    %95 = vmatprep.subr.mxu0 0.0
    %96 = vmatpush1.msra.mxu0 %v61
    %97 = vmatprep.subr.mxu0 0.0
    %98 = vmatpush1.msra.mxu0 %v62
    %99 = vmatprep.subr.mxu0 0.0
    %100 = vmatpush1.msra.mxu0 %v63
    %101 = vmatprep.subr.mxu0 0.0
    %102 = vmatpush1.msra.mxu0 %v64
    %103 = vmatprep.subr.mxu0 0.0
    %104 = vmatpush1.msra.mxu0 %v65
    %105 = vmatprep.subr.mxu0 0.0
    %106 = vmatpush1.msra.mxu0 0.0
    %107 = vmatprep.subr.mxu0 0.0
    %108 = vmatpush1.msra.mxu0 0.0
    %109 = vmatprep.subr.mxu0 0.0
    %110 = vmatpush1.msra.mxu0 0.0
    %111 = vmatprep.subr.mxu0 0.0
    %112 = vmatpush1.msra.mxu0 0.0
    %113 = vmatprep.subr.mxu0 0.0
    %114 = vmatpush1.msra.mxu0 0.0
    %115 = vmatprep.subr.mxu0 0.0
    %116 = vmatpush1.msra.mxu0 0.0
    %117 = vmatprep.subr.mxu0 0.0
    %118 = vmatpush1.msra.mxu0 0.0
    %119 = vmatprep.subr.mxu0 0.0
    %120 = vmatpush1.msra.mxu0 0.0
    %121 = vmatprep.subr.mxu0 0.0
    %122 = vmatpush1.msra.mxu0 0.0
    %123 = vmatprep.subr.mxu0 0.0
    %124 = vmatpush1.msra.mxu0 0.0
    %125 = vmatprep.subr.mxu0 0.0
    %126 = vmatpush1.msra.mxu0 0.0
    %127 = vmatprep.subr.mxu0 0.0
    %128 = vmatpush1.msra.mxu0 0.0
    %129 = vmatprep.subr.mxu0 0.0
    %130 = vmatpush1.msra.mxu0 0.0
    %131 = vmatprep.subr.mxu0 0.0
    %132 = vmatpush1.msra.mxu0 0.0
    %133 = vmatprep.subr.mxu0 0.0
    %134 = vmatpush1.msra.mxu0 0.0
    %135 = vmatprep.subr.mxu0 0.0
    %136 = vmatpush1.msra.mxu0 0.0
    %137 = vmatprep.mubr.f32.mxu0 0.0
    %138 = vmatmul.mubr.f32.gmra.mrb[0].mxu0 %v49
    %v139 = vpop.f32.mrb[0].mxu0
    %v140 = vadd.f32 %v71, %v139
    %v141 = vpop.f32.mrb[0].mxu0
    %142 = vdwg.mxu0
    %v143 = vmax.f32 %v140, 0.0
    %v144 = vld [vmem:[#allocation5] sm:$0xff]
    %v145 = vld [vmem:[#allocation5 + $0x8] sm:$0xff]
    %v146 = vld [vmem:[#allocation5 + $0x10] sm:$0xff]
    %v147 = vld [vmem:[#allocation5 + $0x18] sm:$0xff]
    %v148 = vld [vmem:[#allocation5 + $0x20] sm:$0xff]
    %v149 = vld [vmem:[#allocation5 + $0x28] sm:$0xff]
    %v150 = vld [vmem:[#allocation5 + $0x30] sm:$0xff]
    %v151 = vld [vmem:[#allocation5 + $0x38] sm:$0xff]
    %v152 = vld [vmem:[#allocation5 + $0x40] sm:$0xff]
    %v153 = vld [vmem:[#allocation5 + $0x48] sm:$0xff]
    %v154 = vld [vmem:[#allocation5 + $0x50] sm:$0xff]
    %v155 = vld [vmem:[#allocation5 + $0x58] sm:$0xff]
    %v156 = vld [vmem:[#allocation5 + $0x60] sm:$0xff]
    %v157 = vld [vmem:[#allocation5 + $0x68] sm:$0xff]
    %v158 = vld [vmem:[#allocation5 + $0x70] sm:$0xff]
    %v159 = vld [vmem:[#allocation5 + $0x78] sm:$0xff]
    %v160 = vld [vmem:[%s4] sm:$0x1]
    %v162 = vlaneseq
    %v163 = vshrl.u32 %v162, 7
    %v164 = vsub.s32 0, %v163
    %v165 = vrot.slane %v160, %v164
    %167 = vmatprep.subr.mxu0 0.0
    %168 = vmatpush1.msra.mxu0 %v144
    %169 = vmatprep.subr.mxu0 0.0
    %170 = vmatpush1.msra.mxu0 %v145
    %171 = vmatprep.subr.mxu0 0.0
    %172 = vmatpush1.msra.mxu0 %v146
    %173 = vmatprep.subr.mxu0 0.0
    %174 = vmatpush1.msra.mxu0 %v147
    %175 = vmatprep.subr.mxu0 0.0
    %176 = vmatpush1.msra.mxu0 %v148
    %177 = vmatprep.subr.mxu0 0.0
    %178 = vmatpush1.msra.mxu0 %v149
    %179 = vmatprep.subr.mxu0 0.0
    %180 = vmatpush1.msra.mxu0 %v150
    %181 = vmatprep.subr.mxu0 0.0
    %182 = vmatpush1.msra.mxu0 %v151
    %183 = vmatprep.subr.mxu0 0.0
    %184 = vmatpush1.msra.mxu0 %v152
    %185 = vmatprep.subr.mxu0 0.0
    %186 = vmatpush1.msra.mxu0 %v153
    %187 = vmatprep.subr.mxu0 0.0
    %188 = vmatpush1.msra.mxu0 %v154
    %189 = vmatprep.subr.mxu0 0.0
    %190 = vmatpush1.msra.mxu0 %v155
    %191 = vmatprep.subr.mxu0 0.0
    %192 = vmatpush1.msra.mxu0 %v156
    %193 = vmatprep.subr.mxu0 0.0
    %194 = vmatpush1.msra.mxu0 %v157
    %195 = vmatprep.subr.mxu0 0.0
    %196 = vmatpush1.msra.mxu0 %v158
    %197 = vmatprep.subr.mxu0 0.0
    %198 = vmatpush1.msra.mxu0 %v159
    %199 = vmatprep.subr.mxu0 0.0
    %200 = vmatpush1.msra.mxu0 0.0
    %201 = vmatprep.subr.mxu0 0.0
    %202 = vmatpush1.msra.mxu0 0.0
    %203 = vmatprep.subr.mxu0 0.0
    %204 = vmatpush1.msra.mxu0 0.0
    %205 = vmatprep.subr.mxu0 0.0
    %206 = vmatpush1.msra.mxu0 0.0
    %207 = vmatprep.subr.mxu0 0.0
    %208 = vmatpush1.msra.mxu0 0.0
    %209 = vmatprep.subr.mxu0 0.0
    %210 = vmatpush1.msra.mxu0 0.0
    %211 = vmatprep.subr.mxu0 0.0
    %212 = vmatpush1.msra.mxu0 0.0
    %213 = vmatprep.subr.mxu0 0.0
    %214 = vmatpush1.msra.mxu0 0.0
    %215 = vmatprep.subr.mxu0 0.0
    %216 = vmatpush1.msra.mxu0 0.0
    %217 = vmatprep.subr.mxu0 0.0
    %218 = vmatpush1.msra.mxu0 0.0
    %219 = vmatprep.subr.mxu0 0.0
    %220 = vmatpush1.msra.mxu0 0.0
    %221 = vmatprep.subr.mxu0 0.0
    %222 = vmatpush1.msra.mxu0 0.0
    %223 = vmatprep.subr.mxu0 0.0
    %224 = vmatpush1.msra.mxu0 0.0
    %225 = vmatprep.subr.mxu0 0.0
    %226 = vmatpush1.msra.mxu0 0.0
    %227 = vmatprep.subr.mxu0 0.0
    %228 = vmatpush1.msra.mxu0 0.0
    %229 = vmatprep.subr.mxu0 0.0
    %230 = vmatpush1.msra.mxu0 0.0
    %231 = vmatprep.mubr.f32.mxu0 0.0
    %232 = vmatmul.mubr.f32.gmra.mrb[0].mxu0 %v143
    %v233 = vpop.f32.mrb[0].mxu0
    %v234 = vadd.f32 %v165, %v233
    %v235 = vpop.f32.mrb[0].mxu0
    %236 = vdwg.mxu0
    %237 = vst [vmem:[#allocation7] sm:$0xff] %v234
    // Predicated region
    $region30: #{mlp_forward.1} parent=1 // pred_check
      _
    $region31: #{mlp_forward.1} parent=1 // pred_check_branch
      %239 = sbr.rel (0) target = $region33
    $region32: #{mlp_forward.1} parent=1 // pred_region
      %s241 = ssub.s32 128, 128
      %242 = vsyncadd [#allocation4], %s241
      %s244 = sshll.u32 [#allocation7], 4
      %s245 = int_to_ptr.vmem [resolvable:$true] %s244
      %247 = dma.vmem_to_hbm [thread:$0]  %s245, 128, %s5, [#allocation4]
    $region33: #{mlp_forward.1} parent=1 // pred_fallthru
      _
    // Predicated region
    $region34: #{mlp_forward.1} parent=1 // pred_check
      _
    $region35: #{mlp_forward.1} parent=1 // pred_check_branch
      %249 = sbr.rel (0) target = $region37
    $region36: #{mlp_forward.1} parent=1 // pred_region
      %250 = dma.done [#allocation4], 128
    $region37: #{mlp_forward.1} parent=1 // pred_fallthru
      _
    %251 = vsyncpa [#allocation3], 1
    %252 = vsyncpa [#allocation6], 1
    %253 = vsyncpa [#allocation4], 1

</llo_original>
